<compile_context>
chip_gen: v7x
topology: tpu7x:2x2x1
jax: 0.10.0
libtpu: 0.0.40
codegen_flags: <defaults>
</compile_context>

<pallas_src>
import functools

import jax
import jax.numpy as jnp
import numpy as np
from jax.experimental import pallas as pl
from jax.experimental.pallas import tpu as pltpu

POOL = 4          # MaxPool1d(kernel_size=4, stride=4)
BN_EPS = 1e-5     # PyTorch BatchNorm1d default eps
LANE = 128        # TPU lane width: channel dims padded to a multiple of this


def _round_up(x, m):
    return (x + m - 1) // m * m


def _conv_rows(x_ref, w_ref, l_out):
    """Conv1d(padding already applied) as K shifted matmuls.

    x_ref: (tile_n, L_pad, C_in_pad) bf16, w_ref: (K, C_in_pad, C_out_pad) bf16.
    Returns f32 (tile_n * l_out, C_out_pad).
    """
    tile_n, _, c_in = x_ref.shape
    k = w_ref.shape[0]
    rows = tile_n * l_out
    # Unpack to f32 once so the (sublane-unaligned) tap slices below stay on the plain f32 path;
    # cast back to bf16 right before each dot so the MXU still runs the fast bf16 path.
    x = x_ref[...].astype(jnp.float32)                # (tile_n, L_pad, C_in_pad)
    acc = None
    for j in range(k):                                # static unroll, k is tiny (3)
        xj = x[:, j:j + l_out, :].reshape(rows, c_in).astype(jnp.bfloat16)
        part = jnp.dot(xj, w_ref[j], preferred_element_type=jnp.float32)
        acc = part if acc is None else acc + part
    return acc


def _stats_kernel(x_ref, w_ref, stats_ref, *, l_out):
    # stats_ref: (2, C_out_pad) f32 accumulator; same block for every grid step (resident).
    @pl.when(pl.program_id(0) == 0)
    def _init():
        stats_ref[...] = jnp.zeros_like(stats_ref)

    acc = _conv_rows(x_ref, w_ref, l_out)                     # (rows, C_out_pad) f32
    s = jnp.sum(acc, axis=0, keepdims=True)                   # per-channel sum
    sq = jnp.sum(acc * acc, axis=0, keepdims=True)            # per-channel sum of squares
    stats_ref[...] += jnp.concatenate([s, sq], axis=0)


def _apply_kernel(x_ref, w_ref, affine_ref, o_ref, *, l_out):
    tile_n, l_pool, c_out = o_ref.shape
    acc = _conv_rows(x_ref, w_ref, l_out)                     # (tile_n*l_out, C_out_pad) f32
    scale = affine_ref[0:1, :]                                # gamma * rsqrt(var + eps)
    shift = affine_ref[1:2, :]                                # beta - mean * scale (conv bias folded)
    y = jnp.maximum(acc * scale + shift, 0.0)                 # BN affine + ReLU (f32)
    # MaxPool1d(4,4): per-sample, vectorized reduction, ONE full-block lane-dense store.
    y = y.reshape(tile_n, l_out, c_out)[:, :l_pool * POOL, :]
    y = y.reshape(tile_n * l_pool, POOL, c_out)
    o_ref[...] = jnp.max(y, axis=1).reshape(tile_n, l_pool, c_out).astype(o_ref.dtype)


def conv_block_forward(x, weight, bias, gamma, beta):
    """ConvBlock forward.  x: (N, C_in, L) NCL -> (N, C_out, L_pool), PyTorch training-mode semantics."""
    N, C_in, L = x.shape
    C_out, _, K = weight.shape
    L_pad = L + 2                          # Conv1d padding=1
    L_out = L + 2 - K + 1                  # stride=1, dilation=1
    L_pool = L_out // POOL                 # MaxPool1d floors, like PyTorch
    assert L_pool >= 1, "input too short for MaxPool1d(4, 4)"

    c_in_p = _round_up(C_in, LANE)
    c_out_p = _round_up(C_out, LANE)

    # --- layout glue (plain JAX): channels-last, zero-padded, bf16 operands ---
    x_cl = jnp.transpose(x, (0, 2, 1))                                       # (N, L, C_in)
    x_p = jnp.pad(x_cl, ((0, 0), (1, 1), (0, c_in_p - C_in))).astype(jnp.bfloat16)
    w_p = jnp.pad(jnp.transpose(weight, (2, 1, 0)),                          # (K, C_in, C_out)
                  ((0, 0), (0, c_in_p - C_in), (0, c_out_p - C_out))).astype(jnp.bfloat16)

    # --- batch-tile size: keep double-buffered tiles well inside v7x's scoped VMEM ---
    per_sample = (L_pad * c_in_p * 2              # bf16 input tile
                  + L_out * c_out_p * 4 * 2)      # f32 conv acc + intermediates (slack)
    budget = 8 * 1024 * 1024
    tile_n = max(1, min(N, budget // (2 * per_sample)))       # x2 for double buffering
    if N >= 2:
        tile_n = max(1, min(tile_n, N // 2))                  # keep >=2 grid steps (megacore)
    while N % tile_n:
        tile_n -= 1
    n_tiles = N // tile_n

    vmem_limit = 32 * 1024 * 1024
    flops = 2 * N * L_out * K * c_in_p * c_out_p
    x_bytes = int(np.prod(x_p.shape)) * 2
    w_bytes = int(np.prod(w_p.shape)) * 2

    # --- pass 1: per-channel sum / sum-of-squares of the conv output (reduction over batch tiles) ---
    stats = pl.pallas_call(
        functools.partial(_stats_kernel, l_out=L_out),
        out_shape=jax.ShapeDtypeStruct((2, c_out_p), jnp.float32),
        grid=(n_tiles,),
        in_specs=[
            pl.BlockSpec((tile_n, L_pad, c_in_p), lambda i: (i, 0, 0)),
            pl.BlockSpec((K, c_in_p, c_out_p), lambda i: (0, 0, 0)),
        ],
        out_specs=pl.BlockSpec((2, c_out_p), lambda i: (0, 0)),
        compiler_params=pltpu.CompilerParams(
            dimension_semantics=("arbitrary",),               # accumulates into one resident block
            vmem_limit_bytes=vmem_limit),
        cost_estimate=pl.CostEstimate(
            flops=flops, transcendentals=0,
            bytes_accessed=x_bytes + w_bytes + 2 * c_out_p * 4),
    )(x_p, w_p)

    # --- fold BatchNorm1d (training-mode biased batch stats) + conv bias into scale/shift ---
    count = float(N * L_out)
    mean_conv = stats[0] / count
    var = jnp.maximum(stats[1] / count - mean_conv * mean_conv, 0.0)   # sum/sumsq in f32 (see review)
    rstd = jax.lax.rsqrt(var + BN_EPS)
    gamma_p = jnp.pad(gamma.astype(jnp.float32), (0, c_out_p - C_out))
    beta_p = jnp.pad(beta.astype(jnp.float32), (0, c_out_p - C_out))
    bias_p = jnp.pad(bias.astype(jnp.float32), (0, c_out_p - C_out))
    scale = gamma_p * rstd
    # BN input is z = conv + bias; shift = beta + (bias - mean(z)) * scale  (the conv bias cancels).
    shift = beta_p + (bias_p - (mean_conv + bias_p)) * scale
    affine = jnp.stack([scale, shift], axis=0)                # (2, C_out_pad) f32, one fused input

    # --- pass 2: conv + BN affine + ReLU + MaxPool; batch tiles are independent -> parallel ---
    out_p = pl.pallas_call(
        functools.partial(_apply_kernel, l_out=L_out),
        out_shape=jax.ShapeDtypeStruct((N, L_pool, c_out_p), jnp.float32),
        grid=(n_tiles,),
        in_specs=[
            pl.BlockSpec((tile_n, L_pad, c_in_p), lambda i: (i, 0, 0)),
            pl.BlockSpec((K, c_in_p, c_out_p), lambda i: (0, 0, 0)),
            pl.BlockSpec((2, c_out_p), lambda i: (0, 0)),
        ],
        out_specs=pl.BlockSpec((tile_n, L_pool, c_out_p), lambda i: (i, 0, 0)),
        compiler_params=pltpu.CompilerParams(
            dimension_semantics=("parallel",),                # shard tiles across TCs on v7x
            vmem_limit_bytes=vmem_limit),
        cost_estimate=pl.CostEstimate(
            flops=flops, transcendentals=0,
            bytes_accessed=x_bytes + w_bytes + N * L_pool * c_out_p * 4),
    )(x_p, w_p, affine)

    # Strip channel padding and return PyTorch NCL layout.
    return jnp.transpose(out_p[:, :, :C_out], (0, 2, 1))


def conv_block_reference(x, weight, bias, gamma, beta):
    """Pure numpy reference matching PyTorch semantics (training-mode BN)."""
    x = np.asarray(x, np.float32)
    W = np.asarray(weight, np.float32)
    b = np.asarray(bias, np.float32)
    g = np.asarray(gamma, np.float32)
    bt = np.asarray(beta, np.float32)
    N, C_in, L = x.shape
    C_out, _, K = W.shape
    L_out = L + 2 - K + 1
    xp = np.pad(x, ((0, 0), (0, 0), (1, 1)))
    conv = np.zeros((N, C_out, L_out), np.float32)
    for t in range(L_out):
        conv[:, :, t] = np.einsum("nck,ock->no", xp[:, :, t:t + K], W) + b
    mean = conv.mean(axis=(0, 2), keepdims=True)
    var = conv.var(axis=(0, 2), keepdims=True)   # biased, like PyTorch normalization
    y = (conv - mean) / np.sqrt(var + BN_EPS) * g[None, :, None] + bt[None, :, None]
    y = np.maximum(y, 0.0)
    L_pool = L_out // POOL
    return y[:, :, :L_pool * POOL].reshape(N, C_out, L_pool, POOL).max(axis=-1)


if __name__ == "__main__":
    N, C_in, C_out, K, L = 2, 4, 8, 3, 16
    key = jax.random.PRNGKey(0)
    kx, kw, kb, kg, kbt = jax.random.split(key, 5)

    x = jax.random.normal(kx, (N, C_in, L), jnp.float32)
    bound = 1.0 / np.sqrt(C_in * K)  # PyTorch-style Conv1d init bound
    weight = jax.random.uniform(kw, (C_out, C_in, K), jnp.float32, -bound, bound)
    bias = jax.random.uniform(kb, (C_out,), jnp.float32, -bound, bound)
    gamma = jax.random.uniform(kg, (C_out,), jnp.float32, 0.5, 1.5)
    beta = jax.random.uniform(kbt, (C_out,), jnp.float32, -0.1, 0.1)

    out = jax.block_until_ready(jax.jit(conv_block_forward)(x, weight, bias, gamma, beta))
    ref = conv_block_reference(x, weight, bias, gamma, beta)
    assert out.shape == ref.shape == (N, C_out, L // POOL), (out.shape, ref.shape)
    # bf16 matmul inputs (f32 accumulation) -> modest tolerance.
    np.testing.assert_allclose(np.asarray(out), ref, rtol=5e-2, atol=5e-2)
    print("KERNEL_OK")
</pallas_src>

<mosaic_0001>
module attributes {stable_mosaic.version = 11 : i64} {
  func.func @_stats_kernel(%arg0: i32, %arg1: memref<1x18x128xbf16, #tpu.memory_space<vmem>>, %arg2: memref<3x128x128xbf16, #tpu.memory_space<vmem>>, %arg3: memref<2x128xf32, #tpu.memory_space<vmem>>) attributes {dimension_semantics = [#tpu.dimension_semantics<arbitrary>], iteration_bounds = array<i64: 2>, scalar_prefetch = 0 : i64, scratch_operands = 0 : i64, tpu.core_type = #tpu.core_type<tc>, window_params = [{transform_indices = @transform_0, window_bounds = array<i64: 1, 18, 128>}, {pipeline_mode = #tpu.pipeline_mode<synchronous>, transform_indices = @transform_1, window_bounds = array<i64: 3, 128, 128>}, {pipeline_mode = #tpu.pipeline_mode<synchronous>, transform_indices = @transform_2, window_bounds = array<i64: 2, 128>}]} {
    %c0_i32 = arith.constant 0 : i32
    %0 = arith.cmpi eq, %arg0, %c0_i32 : i32
    %1 = arith.extui %0 : i1 to i32
    %c0_i32_0 = arith.constant 0 : i32
    %2 = arith.cmpi ne, %1, %c0_i32_0 : i32
    scf.if %2 {
      %cst_18 = arith.constant 0.000000e+00 : f32
      %34 = vector.broadcast %cst_18 : f32 to vector<2x128xf32>
      %c0_19 = arith.constant 0 : index
      %c0_20 = arith.constant 0 : index
      %35 = vector.load %arg3[%c0_19, %c0_20] : memref<2x128xf32, #tpu.memory_space<vmem>>, vector<2x128xf32>
      tpu.vector_store %arg3[%c0_19, %c0_20], %34 {strides = array<i32>} : memref<2x128xf32, #tpu.memory_space<vmem>>, vector<2x128xf32>,
    } else {
    }
    %c0 = arith.constant 0 : index
    %c0_1 = arith.constant 0 : index
    %c0_2 = arith.constant 0 : index
    %3 = vector.load %arg1[%c0, %c0_1, %c0_2] : memref<1x18x128xbf16, #tpu.memory_space<vmem>>, vector<1x18x128xbf16>
    %4 = arith.extf %3 : vector<1x18x128xbf16> to vector<1x18x128xf32>
    %5 = vector.extract_strided_slice %4 {offsets = [0, 0, 0], sizes = [1, 16, 128], strides = [1, 1, 1]} : vector<1x18x128xf32> to vector<1x16x128xf32>
    %6 = vector.shape_cast %5 : vector<1x16x128xf32> to vector<16x128xf32>
    %7 = arith.truncf %6 : vector<16x128xf32> to vector<16x128xbf16>
    %c0_3 = arith.constant 0 : index
    %c0_4 = arith.constant 0 : index
    %c0_5 = arith.constant 0 : index
    %8 = vector.load %arg2[%c0_3, %c0_4, %c0_5] : memref<3x128x128xbf16, #tpu.memory_space<vmem>>, vector<1x128x128xbf16>
    %9 = vector.shape_cast %8 : vector<1x128x128xbf16> to vector<128x128xbf16>
    %cst = arith.constant dense<0.000000e+00> : vector<16x128xf32>
    %10 = tpu.matmul %7, %9, %cst {dimension_numbers = #tpu.dot_dimension_numbers<[1], [0], [0], [1], [0, 0, 1, 1], [], []>} : vector<16x128xbf16>, vector<128x128xbf16>, vector<16x128xf32> -> vector<16x128xf32>
    %11 = vector.extract_strided_slice %4 {offsets = [0, 1, 0], sizes = [1, 16, 128], strides = [1, 1, 1]} : vector<1x18x128xf32> to vector<1x16x128xf32>
    %12 = vector.shape_cast %11 : vector<1x16x128xf32> to vector<16x128xf32>
    %13 = arith.truncf %12 : vector<16x128xf32> to vector<16x128xbf16>
    %c1 = arith.constant 1 : index
    %c0_6 = arith.constant 0 : index
    %c0_7 = arith.constant 0 : index
    %14 = vector.load %arg2[%c1, %c0_6, %c0_7] : memref<3x128x128xbf16, #tpu.memory_space<vmem>>, vector<1x128x128xbf16>
    %15 = vector.shape_cast %14 : vector<1x128x128xbf16> to vector<128x128xbf16>
    %cst_8 = arith.constant dense<0.000000e+00> : vector<16x128xf32>
    %16 = tpu.matmul %13, %15, %cst_8 {dimension_numbers = #tpu.dot_dimension_numbers<[1], [0], [0], [1], [0, 0, 1, 1], [], []>} : vector<16x128xbf16>, vector<128x128xbf16>, vector<16x128xf32> -> vector<16x128xf32>
    %17 = arith.addf %10, %16 : vector<16x128xf32>
    %18 = vector.extract_strided_slice %4 {offsets = [0, 2, 0], sizes = [1, 16, 128], strides = [1, 1, 1]} : vector<1x18x128xf32> to vector<1x16x128xf32>
    %19 = vector.shape_cast %18 : vector<1x16x128xf32> to vector<16x128xf32>
    %20 = arith.truncf %19 : vector<16x128xf32> to vector<16x128xbf16>
    %c2 = arith.constant 2 : index
    %c0_9 = arith.constant 0 : index
    %c0_10 = arith.constant 0 : index
    %21 = vector.load %arg2[%c2, %c0_9, %c0_10] : memref<3x128x128xbf16, #tpu.memory_space<vmem>>, vector<1x128x128xbf16>
    %22 = vector.shape_cast %21 : vector<1x128x128xbf16> to vector<128x128xbf16>
    %cst_11 = arith.constant dense<0.000000e+00> : vector<16x128xf32>
    %23 = tpu.matmul %20, %22, %cst_11 {dimension_numbers = #tpu.dot_dimension_numbers<[1], [0], [0], [1], [0, 0, 1, 1], [], []>} : vector<16x128xbf16>, vector<128x128xbf16>, vector<16x128xf32> -> vector<16x128xf32>
    %24 = arith.addf %17, %23 : vector<16x128xf32>
    %cst_12 = arith.constant dense<0.000000e+00> : vector<128xf32>
    %25 = vector.multi_reduction <add>, %24, %cst_12 [0] : vector<16x128xf32> to vector<128xf32>
    %26 = vector.shape_cast %25 : vector<128xf32> to vector<1x128xf32>
    %27 = arith.mulf %24, %24 : vector<16x128xf32>
    %cst_13 = arith.constant dense<0.000000e+00> : vector<128xf32>
    %28 = vector.multi_reduction <add>, %27, %cst_13 [0] : vector<16x128xf32> to vector<128xf32>
    %29 = vector.shape_cast %28 : vector<128xf32> to vector<1x128xf32>
    %c0_14 = arith.constant 0 : index
    %c0_15 = arith.constant 0 : index
    %30 = vector.load %arg3[%c0_14, %c0_15] : memref<2x128xf32, #tpu.memory_space<vmem>>, vector<2x128xf32>
    %31 = tpu.concatenate %26, %29 in 0 : vector<1x128xf32>, vector<1x128xf32> -> vector<2x128xf32>
    %32 = arith.addf %30, %31 : vector<2x128xf32>
    %c0_16 = arith.constant 0 : index
    %c0_17 = arith.constant 0 : index
    %33 = vector.load %arg3[%c0_16, %c0_17] : memref<2x128xf32, #tpu.memory_space<vmem>>, vector<2x128xf32>
    tpu.vector_store %arg3[%c0_16, %c0_17], %32 {strides = array<i32>} : memref<2x128xf32, #tpu.memory_space<vmem>>, vector<2x128xf32>,
    return
  }
  func.func @transform_0(%arg0: i32) -> (i32, i32, i32) {
    %c0_i32 = arith.constant 0 : i32
    %c0_i32_0 = arith.constant 0 : i32
    %c0_i32_1 = arith.constant 0 : i32
    return %arg0, %c0_i32, %c0_i32_0 : i32, i32, i32
  }
  func.func @transform_1(%arg0: i32) -> (i32, i32, i32) {
    %c0_i32 = arith.constant 0 : i32
    %c0_i32_0 = arith.constant 0 : i32
    %c0_i32_1 = arith.constant 0 : i32
    %c0_i32_2 = arith.constant 0 : i32
    return %c0_i32, %c0_i32_0, %c0_i32_1 : i32, i32, i32
  }
  func.func @transform_2(%arg0: i32) -> (i32, i32) {
    %c0_i32 = arith.constant 0 : i32
    %c0_i32_0 = arith.constant 0 : i32
    %c0_i32_1 = arith.constant 0 : i32
    return %c0_i32, %c0_i32_0 : i32, i32
  }
}

module attributes {stable_mosaic.version = 11 : i64} {
  func.func @_apply_kernel(%arg0: i32, %arg1: memref<1x18x128xbf16, #tpu.memory_space<vmem>>, %arg2: memref<3x128x128xbf16, #tpu.memory_space<vmem>>, %arg3: memref<2x128xf32, #tpu.memory_space<vmem>>, %arg4: memref<1x4x128xf32, #tpu.memory_space<vmem>>) attributes {dimension_semantics = [#tpu.dimension_semantics<parallel>], iteration_bounds = array<i64: 2>, scalar_prefetch = 0 : i64, scratch_operands = 0 : i64, tpu.core_type = #tpu.core_type<tc>, window_params = [{transform_indices = @transform_0, window_bounds = array<i64: 1, 18, 128>}, {pipeline_mode = #tpu.pipeline_mode<synchronous>, transform_indices = @transform_1, window_bounds = array<i64: 3, 128, 128>}, {pipeline_mode = #tpu.pipeline_mode<synchronous>, transform_indices = @transform_2, window_bounds = array<i64: 2, 128>}, {transform_indices = @transform_3, window_bounds = array<i64: 1, 4, 128>}]} {
    %c0 = arith.constant 0 : index
    %c0_0 = arith.constant 0 : index
    %c0_1 = arith.constant 0 : index
    %0 = vector.load %arg1[%c0, %c0_0, %c0_1] : memref<1x18x128xbf16, #tpu.memory_space<vmem>>, vector<1x18x128xbf16>
    %1 = arith.extf %0 : vector<1x18x128xbf16> to vector<1x18x128xf32>
    %2 = vector.extract_strided_slice %1 {offsets = [0, 0, 0], sizes = [1, 16, 128], strides = [1, 1, 1]} : vector<1x18x128xf32> to vector<1x16x128xf32>
    %3 = vector.shape_cast %2 : vector<1x16x128xf32> to vector<16x128xf32>
    %4 = arith.truncf %3 : vector<16x128xf32> to vector<16x128xbf16>
    %c0_2 = arith.constant 0 : index
    %c0_3 = arith.constant 0 : index
    %c0_4 = arith.constant 0 : index
    %5 = vector.load %arg2[%c0_2, %c0_3, %c0_4] : memref<3x128x128xbf16, #tpu.memory_space<vmem>>, vector<1x128x128xbf16>
    %6 = vector.shape_cast %5 : vector<1x128x128xbf16> to vector<128x128xbf16>
    %cst = arith.constant dense<0.000000e+00> : vector<16x128xf32>
    %7 = tpu.matmul %4, %6, %cst {dimension_numbers = #tpu.dot_dimension_numbers<[1], [0], [0], [1], [0, 0, 1, 1], [], []>} : vector<16x128xbf16>, vector<128x128xbf16>, vector<16x128xf32> -> vector<16x128xf32>
    %8 = vector.extract_strided_slice %1 {offsets = [0, 1, 0], sizes = [1, 16, 128], strides = [1, 1, 1]} : vector<1x18x128xf32> to vector<1x16x128xf32>
    %9 = vector.shape_cast %8 : vector<1x16x128xf32> to vector<16x128xf32>
    %10 = arith.truncf %9 : vector<16x128xf32> to vector<16x128xbf16>
    %c1 = arith.constant 1 : index
    %c0_5 = arith.constant 0 : index
    %c0_6 = arith.constant 0 : index
    %11 = vector.load %arg2[%c1, %c0_5, %c0_6] : memref<3x128x128xbf16, #tpu.memory_space<vmem>>, vector<1x128x128xbf16>
    %12 = vector.shape_cast %11 : vector<1x128x128xbf16> to vector<128x128xbf16>
    %cst_7 = arith.constant dense<0.000000e+00> : vector<16x128xf32>
    %13 = tpu.matmul %10, %12, %cst_7 {dimension_numbers = #tpu.dot_dimension_numbers<[1], [0], [0], [1], [0, 0, 1, 1], [], []>} : vector<16x128xbf16>, vector<128x128xbf16>, vector<16x128xf32> -> vector<16x128xf32>
    %14 = arith.addf %7, %13 : vector<16x128xf32>
    %15 = vector.extract_strided_slice %1 {offsets = [0, 2, 0], sizes = [1, 16, 128], strides = [1, 1, 1]} : vector<1x18x128xf32> to vector<1x16x128xf32>
    %16 = vector.shape_cast %15 : vector<1x16x128xf32> to vector<16x128xf32>
    %17 = arith.truncf %16 : vector<16x128xf32> to vector<16x128xbf16>
    %c2 = arith.constant 2 : index
    %c0_8 = arith.constant 0 : index
    %c0_9 = arith.constant 0 : index
    %18 = vector.load %arg2[%c2, %c0_8, %c0_9] : memref<3x128x128xbf16, #tpu.memory_space<vmem>>, vector<1x128x128xbf16>
    %19 = vector.shape_cast %18 : vector<1x128x128xbf16> to vector<128x128xbf16>
    %cst_10 = arith.constant dense<0.000000e+00> : vector<16x128xf32>
    %20 = tpu.matmul %17, %19, %cst_10 {dimension_numbers = #tpu.dot_dimension_numbers<[1], [0], [0], [1], [0, 0, 1, 1], [], []>} : vector<16x128xbf16>, vector<128x128xbf16>, vector<16x128xf32> -> vector<16x128xf32>
    %21 = arith.addf %14, %20 : vector<16x128xf32>
    %c0_11 = arith.constant 0 : index
    %c0_12 = arith.constant 0 : index
    %22 = vector.load %arg3[%c0_11, %c0_12] : memref<2x128xf32, #tpu.memory_space<vmem>>, vector<1x128xf32>
    %c1_13 = arith.constant 1 : index
    %c0_14 = arith.constant 0 : index
    %23 = vector.load %arg3[%c1_13, %c0_14] : memref<2x128xf32, #tpu.memory_space<vmem>>, vector<1x128xf32>
    %24 = vector.broadcast %22 : vector<1x128xf32> to vector<16x128xf32>
    %25 = arith.mulf %21, %24 : vector<16x128xf32>
    %26 = vector.broadcast %23 : vector<1x128xf32> to vector<16x128xf32>
    %27 = arith.addf %25, %26 : vector<16x128xf32>
    %cst_15 = arith.constant 0.000000e+00 : f32
    %28 = vector.broadcast %cst_15 : f32 to vector<16x128xf32>
    %29 = arith.maximumf %27, %28 : vector<16x128xf32>
    %30 = vector.shape_cast %29 : vector<16x128xf32> to vector<1x16x128xf32>
    %31 = vector.shape_cast %30 : vector<1x16x128xf32> to vector<4x4x128xf32>
    %cst_16 = arith.constant dense<0xFF800000> : vector<4x128xf32>
    %32 = vector.multi_reduction <maximumf>, %31, %cst_16 [1] : vector<4x4x128xf32> to vector<4x128xf32>
    %33 = vector.shape_cast %32 : vector<4x128xf32> to vector<1x4x128xf32>
    %c0_17 = arith.constant 0 : index
    %c0_18 = arith.constant 0 : index
    %c0_19 = arith.constant 0 : index
    %34 = vector.load %arg4[%c0_17, %c0_18, %c0_19] : memref<1x4x128xf32, #tpu.memory_space<vmem>>, vector<1x4x128xf32>
    tpu.vector_store %arg4[%c0_17, %c0_18, %c0_19], %33 {strides = array<i32>} : memref<1x4x128xf32, #tpu.memory_space<vmem>>, vector<1x4x128xf32>,
    return
  }
  func.func @transform_0(%arg0: i32) -> (i32, i32, i32) {
    %c0_i32 = arith.constant 0 : i32
    %c0_i32_0 = arith.constant 0 : i32
    %c0_i32_1 = arith.constant 0 : i32
    return %arg0, %c0_i32, %c0_i32_0 : i32, i32, i32
  }
  func.func @transform_1(%arg0: i32) -> (i32, i32, i32) {
    %c0_i32 = arith.constant 0 : i32
    %c0_i32_0 = arith.constant 0 : i32
    %c0_i32_1 = arith.constant 0 : i32
    %c0_i32_2 = arith.constant 0 : i32
    return %c0_i32, %c0_i32_0, %c0_i32_1 : i32, i32, i32
  }
  func.func @transform_2(%arg0: i32) -> (i32, i32) {
    %c0_i32 = arith.constant 0 : i32
    %c0_i32_0 = arith.constant 0 : i32
    %c0_i32_1 = arith.constant 0 : i32
    return %c0_i32, %c0_i32_0 : i32, i32
  }
  func.func @transform_3(%arg0: i32) -> (i32, i32, i32) {
    %c0_i32 = arith.constant 0 : i32
    %c0_i32_0 = arith.constant 0 : i32
    %c0_i32_1 = arith.constant 0 : i32
    return %arg0, %c0_i32, %c0_i32_0 : i32, i32, i32
  }
}

</mosaic_0001>

<llo_original>
// kernel: conv_block_forward.3
$region0: #{conv_block_forward.3}
  #allocation0 [shape = 'u32[]', space=smem, size = 0x4, offset = 0x4, fixed_abs, tag = 'smem constant byte address 0x4 - core index']
  #allocation1 [shape = 'u32[144,128]{1,0:T(1,128)}', space=vmem, size = 0x12000, scoped, tag = 'internal scratch']
  %s0 = inlined_call_operand.vmem [shape: bf16[2,18,128], index: 0, kind: input, shape index: {}]
  %s1 = inlined_call_operand.vmem [shape: bf16[3,128,128], index: 1, kind: input, shape index: {}]
  %s2 = inlined_call_operand.vmem [shape: f32[2,128], index: 2, kind: input, shape index: {}]
  %s3 = inlined_call_operand.vmem [shape: f32[2,4,128], index: 3, kind: output, shape index: {}]
  %s4 = sld [smem:[#allocation0]]
  $region45: #{conv_block_forward.3} parent=0
    _
  %s6 = ssub.s32 1, %s4
  %s7 = scalar_select 0, %s6, %s4
  loop: start=0, step=1, limit=4
  $region2: #{conv_block_forward.3} parent=0 // loop_pre_header
    _
  $region3: #{conv_block_forward.3} parent=0 // loop_header
    %s9 = sphi 0, %s13
    %p10 = scmp.ge.s32.totalorder %s9, 4
    %s19 = sphi 0, %s21
    %s22 = sphi 0, %s19
    %s23 = sphi 0, %s22
    %s39 = sphi 0, %s23
    %s43 = sphi 0, %s43
    %s45 = sphi 0, %s43
    %s46 = sphi 0, %s45
    %s60 = sphi 0, %s46
    %s64 = sphi 0, %s64
    %s66 = sphi 0, %s64
    %s67 = sphi 0, %s66
    %s81 = sphi 0, %s67
    %s87 = sphi 0, %s89
    %s90 = sphi 0, %s87
    %s91 = sphi 0, %s90
    %s107 = sphi 0, %s91
  $region4: #{conv_block_forward.3} parent=0 // loop_header_branch
    %12 = sbr.rel (%p10) target = $region8
  $region5: #{conv_block_forward.3} parent=0 // loop_body
    %s14 = ssub.s32 %s9, 1
    %s15 = ssub.s32 %s9, 2
    %s16 = sadd.s32 %s9, 1
    %s17 = ssub.s32 %s9, %s16
    %p18 = scmp.eq.s32.totalorder %s17, 0
    %s20 = sadd.s32 %s19, 1
    %s21 = scalar_select %p18, %s19, %s20
    %p24 = pneg %p18
    %p25 = scmp.eq.s32.totalorder %s9, 1
    %p26 = por %p24, %p25
    %p27 = scmp.ne.s32.totalorder %s19, %s22
    %p28 = scmp.eq.s32.totalorder %s9, 0
    %p29 = por %p27, %p28
    %p30 = scmp.ne.s32.totalorder %s19, %s22
    %p31 = scmp.eq.s32.totalorder %s14, 1
    %p32 = por %p30, %p31
    %p33 = scmp.ne.s32.totalorder %s22, %s23
    %p34 = scmp.eq.s32.totalorder %s14, 0
    %p35 = por %p33, %p34
    %p36 = scmp.ne.s32.totalorder %s22, %s23
    %p37 = scmp.eq.s32.totalorder %s15, 1
    %p38 = por %p36, %p37
    %p40 = scmp.ne.s32.totalorder %s23, %s39
    %p41 = scmp.eq.s32.totalorder %s15, 0
    %p42 = por %p40, %p41
    %s44 = sadd.s32 %s43, 1
    %p47 = scmp.eq.s32.totalorder %s9, 1
    %p48 = scmp.ne.s32.totalorder %s43, %s45
    %p49 = scmp.eq.s32.totalorder %s9, 0
    %p50 = por %p48, %p49
    %p51 = scmp.ne.s32.totalorder %s43, %s45
    %p52 = scmp.eq.s32.totalorder %s14, 1
    %p53 = por %p51, %p52
    %p54 = scmp.ne.s32.totalorder %s45, %s46
    %p55 = scmp.eq.s32.totalorder %s14, 0
    %p56 = por %p54, %p55
    %p57 = scmp.ne.s32.totalorder %s45, %s46
    %p58 = scmp.eq.s32.totalorder %s15, 1
    %p59 = por %p57, %p58
    %p61 = scmp.ne.s32.totalorder %s46, %s60
    %p62 = scmp.eq.s32.totalorder %s15, 0
    %p63 = por %p61, %p62
    %s65 = sadd.s32 %s64, 1
    %p68 = scmp.eq.s32.totalorder %s9, 1
    %p69 = scmp.ne.s32.totalorder %s64, %s66
    %p70 = scmp.eq.s32.totalorder %s9, 0
    %p71 = por %p69, %p70
    %p72 = scmp.ne.s32.totalorder %s64, %s66
    %p73 = scmp.eq.s32.totalorder %s14, 1
    %p74 = por %p72, %p73
    %p75 = scmp.ne.s32.totalorder %s66, %s67
    %p76 = scmp.eq.s32.totalorder %s14, 0
    %p77 = por %p75, %p76
    %p78 = scmp.ne.s32.totalorder %s66, %s67
    %p79 = scmp.eq.s32.totalorder %s15, 1
    %p80 = por %p78, %p79
    %p82 = scmp.ne.s32.totalorder %s67, %s81
    %p83 = scmp.eq.s32.totalorder %s15, 0
    %p84 = por %p82, %p83
    %s85 = ssub.s32 %s9, %s16
    %p86 = scmp.eq.s32.totalorder %s85, 0
    %s88 = sadd.s32 %s87, 1
    %s89 = scalar_select %p86, %s87, %s88
    %p92 = pneg %p86
    %p93 = scmp.eq.s32.totalorder %s9, 1
    %p94 = por %p92, %p93
    %p95 = scmp.ne.s32.totalorder %s87, %s90
    %p96 = scmp.eq.s32.totalorder %s9, 0
    %p97 = por %p95, %p96
    %p98 = scmp.ne.s32.totalorder %s87, %s90
    %p99 = scmp.eq.s32.totalorder %s14, 1
    %p100 = por %p98, %p99
    %p101 = scmp.ne.s32.totalorder %s90, %s91
    %p102 = scmp.eq.s32.totalorder %s14, 0
    %p103 = por %p101, %p102
    %p104 = scmp.ne.s32.totalorder %s90, %s91
    %p105 = scmp.eq.s32.totalorder %s15, 1
    %p106 = por %p104, %p105
    %p108 = scmp.ne.s32.totalorder %s91, %s107
    %p109 = scmp.eq.s32.totalorder %s15, 0
    %p110 = por %p108, %p109
    %p111 = scmp.le.s32.totalorder 1, %s9
    %p112 = scmp.lt.s32.totalorder %s9, 3
    %p113 = pnand %p111, %p112
    %p114 = pneg %p113
    // Predicated region
    $region9: #{conv_block_forward.3} parent=5 // pred_check
      _
    $region10: #{conv_block_forward.3} parent=5 // pred_check_branch
      %116 = sbr.rel (%p113) target = $region12
    $region11: #{conv_block_forward.3} parent=5 // pred_region
      %s117 = ssub.s32 %s9, 1
      // Predicated region
      $region13: #{conv_block_forward.3} parent=11 // pred_check
        %p118 = pneg %p56
      $region14: #{conv_block_forward.3} parent=11 // pred_check_branch
        %120 = sbr.rel (%p118) target = $region16
      $region15: #{conv_block_forward.3} parent=11 // pred_region
        _
      $region16: #{conv_block_forward.3} parent=11 // pred_fallthru
        _
      // Predicated region
      $region17: #{conv_block_forward.3} parent=11 // pred_check
        %p121 = pneg %p77
      $region18: #{conv_block_forward.3} parent=11 // pred_check_branch
        %123 = sbr.rel (%p121) target = $region20
      $region19: #{conv_block_forward.3} parent=11 // pred_region
        _
      $region20: #{conv_block_forward.3} parent=11 // pred_fallthru
        _
    $region12: #{conv_block_forward.3} parent=5 // pred_fallthru
      _
    %p124 = scmp.lt.s32.totalorder %s9, 2
    // Predicated region
    $region21: #{conv_block_forward.3} parent=5 // pred_check
      %p125 = pneg %p124
    $region22: #{conv_block_forward.3} parent=5 // pred_check_branch
      %127 = sbr.rel (%p125) target = $region24
    $region23: #{conv_block_forward.3} parent=5 // pred_region
      // Predicated region
      $region25: #{conv_block_forward.3} parent=23 // pred_check
        %p128 = pneg %p29
      $region26: #{conv_block_forward.3} parent=23 // pred_check_branch
        %130 = sbr.rel (%p128) target = $region28
      $region27: #{conv_block_forward.3} parent=23 // pred_region
        %p131 = scmp.lt.s32.totalorder %s9, 1
        %s132 = scalar_select %p131, %s9, 1
        %s133 = smul.addr %s132, 3
        %s134 = smul.addr %s133, 4
        %s135 = scalar_lea.vmem %s0, %s134
      $region28: #{conv_block_forward.3} parent=23 // pred_fallthru
        _
    $region24: #{conv_block_forward.3} parent=5 // pred_fallthru
      _
    %p136 = scmp.le.s32.totalorder 1, %s9
    %p137 = scmp.lt.s32.totalorder %s9, 3
    %p138 = pnand %p136, %p137
    %p139 = pneg %p138
    // Predicated region
    $region29: #{conv_block_forward.3} parent=5 // pred_check
      _
    $region30: #{conv_block_forward.3} parent=5 // pred_check_branch
      %141 = sbr.rel (%p138) target = $region32
    $region31: #{conv_block_forward.3} parent=5 // pred_region
      %s142 = ssub.s32 %s9, 1
      %p143 = scmp.lt.s32.totalorder %s14, 1
      %s144 = scalar_select %p143, %s14, 1
      %s145 = smul.addr %s144, 3
      %s146 = smul.addr %s145, 4
      %s147 = scalar_lea.vmem %s0, %s146
      %p148 = pneg %p35
      %p149 = pneg %p32
      %p150 = pneg %p56
      %p151 = pneg %p53
      %p152 = pneg %p77
      %p153 = pneg %p74
      %p154 = pneg %p103
      %p155 = pneg %p100
      %p156 = scmp.lt.s32.totalorder %s14, 1
      %s157 = scalar_select %p156, %s14, 1
      %s158 = smul.addr %s157, 4
      %s159 = scalar_lea.vmem %s3, %s158
      %p160 = scmp.lt.s32.totalorder %s14, 1
      %s161 = scalar_select %p160, %s14, 1
      %s162 = smul.addr %s161, 3
      %s163 = smul.addr %s162, 4
      %s164 = scalar_lea.vmem %s0, %s163
      %p165 = scmp.lt.s32.totalorder %s14, 1
      %s166 = scalar_select %p165, %s14, 1
      %s167 = smul.addr %s166, 4
      %s168 = scalar_lea.vmem %s3, %s167
      %v170 = vld [vmem:[%s164] sm:$0xf]
      %v171 = vld [vmem:[%s164 + $0x4] sm:$0xf]
      %v172 = vld [vmem:[%s164 + $0x8] sm:$0x1]
      %v173 = vunpack.c.l.bf16 %v170
      %v174 = vunpack.c.l.bf16 %v171
      %v175 = vunpack.c.l.bf16 %v172
      %v176 = vpack.c.bf16 %v174, %v173
      %v177 = vld [vmem:[%s1] sm:$0xf]
      %v178 = vld [vmem:[%s1 + $0x4] sm:$0xf]
      %v179 = vld [vmem:[%s1 + $0x8] sm:$0xf]
      %v180 = vld [vmem:[%s1 + $0xc] sm:$0xf]
      %v181 = vld [vmem:[%s1 + $0x10] sm:$0xf]
      %v182 = vld [vmem:[%s1 + $0x14] sm:$0xf]
      %v183 = vld [vmem:[%s1 + $0x18] sm:$0xf]
      %v184 = vld [vmem:[%s1 + $0x1c] sm:$0xf]
      %v185 = vld [vmem:[%s1 + $0x20] sm:$0xf]
      %v186 = vld [vmem:[%s1 + $0x24] sm:$0xf]
      %v187 = vld [vmem:[%s1 + $0x28] sm:$0xf]
      %v188 = vld [vmem:[%s1 + $0x2c] sm:$0xf]
      %v189 = vld [vmem:[%s1 + $0x30] sm:$0xf]
      %v190 = vld [vmem:[%s1 + $0x34] sm:$0xf]
      %v191 = vld [vmem:[%s1 + $0x38] sm:$0xf]
      %v192 = vld [vmem:[%s1 + $0x3c] sm:$0xf]
      %v193 = vpack.c.bf16 %v175, %v175
      %s194 = scalar_lea.vmem %s1, 64
      %v195 = vld [vmem:[%s194] sm:$0xf]
      %v196 = vld [vmem:[%s194 + $0x4] sm:$0xf]
      %v197 = vld [vmem:[%s194 + $0x8] sm:$0xf]
      %v198 = vld [vmem:[%s194 + $0xc] sm:$0xf]
      %v199 = vld [vmem:[%s194 + $0x10] sm:$0xf]
      %v200 = vld [vmem:[%s194 + $0x14] sm:$0xf]
      %v201 = vld [vmem:[%s194 + $0x18] sm:$0xf]
      %v202 = vld [vmem:[%s194 + $0x1c] sm:$0xf]
      %v203 = vld [vmem:[%s194 + $0x20] sm:$0xf]
      %v204 = vld [vmem:[%s194 + $0x24] sm:$0xf]
      %v205 = vld [vmem:[%s194 + $0x28] sm:$0xf]
      %v206 = vld [vmem:[%s194 + $0x2c] sm:$0xf]
      %v207 = vld [vmem:[%s194 + $0x30] sm:$0xf]
      %v208 = vld [vmem:[%s194 + $0x34] sm:$0xf]
      %v209 = vld [vmem:[%s194 + $0x38] sm:$0xf]
      %v210 = vld [vmem:[%s194 + $0x3c] sm:$0xf]
      %vm211 = vsmask.f32 7424
      %v213 = vshrl.u32 %v176, 16
      %v215 = vshll.u32 %v176, 16
      %v217 = vrot.slane %v215, 1
      %v218 = vor.u32 %v213, %v217
      %v220 = vshll.u32 %v193, 16
      %v222 = vrot.slane %v220, 1
      %v223 = vsel %vm211, %v218, %v222
      %v241 = vunpack.c.l.b16 %v195
      %v242 = vunpack.c.l.b16 %v196
      %v243 = vunpack.c.l.b16 %v197
      %v244 = vunpack.c.l.b16 %v198
      %v245 = vunpack.c.l.b16 %v199
      %v246 = vunpack.c.l.b16 %v200
      %v247 = vunpack.c.l.b16 %v201
      %v248 = vunpack.c.l.b16 %v202
      %v249 = vunpack.c.l.b16 %v203
      %v250 = vunpack.c.l.b16 %v204
      %v251 = vunpack.c.l.b16 %v205
      %v252 = vunpack.c.l.b16 %v206
      %v253 = vunpack.c.l.b16 %v207
      %v254 = vunpack.c.l.b16 %v208
      %v255 = vunpack.c.l.b16 %v209
      %v256 = vunpack.c.l.b16 %v210
      %v257 = vpack.c.b16 %v242, %v241
      %v258 = vpack.c.b16 %v244, %v243
      %v259 = vpack.c.b16 %v246, %v245
      %v260 = vpack.c.b16 %v248, %v247
      %v261 = vpack.c.b16 %v250, %v249
      %v262 = vpack.c.b16 %v252, %v251
      %v263 = vpack.c.b16 %v254, %v253
      %v264 = vpack.c.b16 %v256, %v255
      %273 = vmatprep.subr.bf16.mxu0 0
      %274 = vmatpush1.bf16.msra.mxu0 %v257
      %275 = vmatprep.subr.bf16.mxu0 0
      %276 = vmatpush1.bf16.msra.mxu0 %v258
      %277 = vmatprep.subr.bf16.mxu0 0
      %278 = vmatpush1.bf16.msra.mxu0 %v259
      %279 = vmatprep.subr.bf16.mxu0 0
      %280 = vmatpush1.bf16.msra.mxu0 %v260
      %281 = vmatprep.subr.bf16.mxu0 0
      %282 = vmatpush1.bf16.msra.mxu0 %v261
      %283 = vmatprep.subr.bf16.mxu0 0
      %284 = vmatpush1.bf16.msra.mxu0 %v262
      %285 = vmatprep.subr.bf16.mxu0 0
      %286 = vmatpush1.bf16.msra.mxu0 %v263
      %287 = vmatprep.subr.bf16.mxu0 0
      %288 = vmatpush1.bf16.msra.mxu0 %v264
      %289 = vmatprep.subr.bf16.mxu0 0
      %290 = vmatpush1.bf16.msra.mxu0 0
      %291 = vmatprep.subr.bf16.mxu0 0
      %292 = vmatpush1.bf16.msra.mxu0 0
      %293 = vmatprep.subr.bf16.mxu0 0
      %294 = vmatpush1.bf16.msra.mxu0 0
      %295 = vmatprep.subr.bf16.mxu0 0
      %296 = vmatpush1.bf16.msra.mxu0 0
      %297 = vmatprep.subr.bf16.mxu0 0
      %298 = vmatpush1.bf16.msra.mxu0 0
      %299 = vmatprep.subr.bf16.mxu0 0
      %300 = vmatpush1.bf16.msra.mxu0 0
      %301 = vmatprep.subr.bf16.mxu0 0
      %302 = vmatpush1.bf16.msra.mxu0 0
      %303 = vmatprep.subr.bf16.mxu0 0
      %304 = vmatpush1.bf16.msra.mxu0 0
      %305 = vmatprep.mubr.bf16.mxu0 0
      %306 = vmatmul.mubr.bf16.gmra.mrb[0].mxu0 %v223
      %v307 = vpop.f32.mrb[0].mxu0
      %v308 = vadd.f32 0.0, %v307
      %v309 = vpop.f32.mrb[0].mxu0
      %v310 = vpop.f32.mrb[0].mxu0
      %v311 = vadd.f32 0.0, %v310
      %v312 = vpop.f32.mrb[0].mxu0
      %313 = vdwg.mxu0
      %v330 = vunpack.c.l.b16 %v177
      %v331 = vunpack.c.l.b16 %v178
      %v332 = vunpack.c.l.b16 %v179
      %v333 = vunpack.c.l.b16 %v180
      %v334 = vunpack.c.l.b16 %v181
      %v335 = vunpack.c.l.b16 %v182
      %v336 = vunpack.c.l.b16 %v183
      %v337 = vunpack.c.l.b16 %v184
      %v338 = vunpack.c.l.b16 %v185
      %v339 = vunpack.c.l.b16 %v186
      %v340 = vunpack.c.l.b16 %v187
      %v341 = vunpack.c.l.b16 %v188
      %v342 = vunpack.c.l.b16 %v189
      %v343 = vunpack.c.l.b16 %v190
      %v344 = vunpack.c.l.b16 %v191
      %v345 = vunpack.c.l.b16 %v192
      %v346 = vpack.c.b16 %v331, %v330
      %v347 = vpack.c.b16 %v333, %v332
      %v348 = vpack.c.b16 %v335, %v334
      %v349 = vpack.c.b16 %v337, %v336
      %v350 = vpack.c.b16 %v339, %v338
      %v351 = vpack.c.b16 %v341, %v340
      %v352 = vpack.c.b16 %v343, %v342
      %v353 = vpack.c.b16 %v345, %v344
      %362 = vmatprep.subr.bf16.mxu0 0
      %363 = vmatpush1.bf16.msra.mxu0 %v346
      %364 = vmatprep.subr.bf16.mxu0 0
      %365 = vmatpush1.bf16.msra.mxu0 %v347
      %366 = vmatprep.subr.bf16.mxu0 0
      %367 = vmatpush1.bf16.msra.mxu0 %v348
      %368 = vmatprep.subr.bf16.mxu0 0
      %369 = vmatpush1.bf16.msra.mxu0 %v349
      %370 = vmatprep.subr.bf16.mxu0 0
      %371 = vmatpush1.bf16.msra.mxu0 %v350
      %372 = vmatprep.subr.bf16.mxu0 0
      %373 = vmatpush1.bf16.msra.mxu0 %v351
      %374 = vmatprep.subr.bf16.mxu0 0
      %375 = vmatpush1.bf16.msra.mxu0 %v352
      %376 = vmatprep.subr.bf16.mxu0 0
      %377 = vmatpush1.bf16.msra.mxu0 %v353
      %378 = vmatprep.subr.bf16.mxu0 0
      %379 = vmatpush1.bf16.msra.mxu0 0
      %380 = vmatprep.subr.bf16.mxu0 0
      %381 = vmatpush1.bf16.msra.mxu0 0
      %382 = vmatprep.subr.bf16.mxu0 0
      %383 = vmatpush1.bf16.msra.mxu0 0
      %384 = vmatprep.subr.bf16.mxu0 0
      %385 = vmatpush1.bf16.msra.mxu0 0
      %386 = vmatprep.subr.bf16.mxu0 0
      %387 = vmatpush1.bf16.msra.mxu0 0
      %388 = vmatprep.subr.bf16.mxu0 0
      %389 = vmatpush1.bf16.msra.mxu0 0
      %390 = vmatprep.subr.bf16.mxu0 0
      %391 = vmatpush1.bf16.msra.mxu0 0
      %392 = vmatprep.subr.bf16.mxu0 0
      %393 = vmatpush1.bf16.msra.mxu0 0
      %394 = vmatprep.mubr.bf16.mxu0 0
      %395 = vmatmul.mubr.bf16.gmra.mrb[0].mxu0 %v176
      %v396 = vpop.f32.mrb[0].mxu0
      %v397 = vadd.f32 %v308, %v396
      %v398 = vpop.f32.mrb[0].mxu0
      %v399 = vpop.f32.mrb[0].mxu0
      %v400 = vadd.f32 %v311, %v399
      %v401 = vpop.f32.mrb[0].mxu0
      %402 = vdwg.mxu0
      %s403 = scalar_lea.vmem %s1, 128
      %v404 = vld [vmem:[%s403] sm:$0xf]
      %v405 = vld [vmem:[%s403 + $0x4] sm:$0xf]
      %v406 = vld [vmem:[%s403 + $0x8] sm:$0xf]
      %v407 = vld [vmem:[%s403 + $0xc] sm:$0xf]
      %v408 = vld [vmem:[%s403 + $0x10] sm:$0xf]
      %v409 = vld [vmem:[%s403 + $0x14] sm:$0xf]
      %v410 = vld [vmem:[%s403 + $0x18] sm:$0xf]
      %v411 = vld [vmem:[%s403 + $0x1c] sm:$0xf]
      %v412 = vld [vmem:[%s403 + $0x20] sm:$0xf]
      %v413 = vld [vmem:[%s403 + $0x24] sm:$0xf]
      %v414 = vld [vmem:[%s403 + $0x28] sm:$0xf]
      %v415 = vld [vmem:[%s403 + $0x2c] sm:$0xf]
      %v416 = vld [vmem:[%s403 + $0x30] sm:$0xf]
      %v417 = vld [vmem:[%s403 + $0x34] sm:$0xf]
      %v418 = vld [vmem:[%s403 + $0x38] sm:$0xf]
      %v419 = vld [vmem:[%s403 + $0x3c] sm:$0xf]
      %vm422 = vcmask 1046528
      %v423 = vrot.slane %v176, 1
      %v424 = vrot.slane %v193, 1
      %v425 = vsel %vm422, %v423, %v424
      %v443 = vunpack.c.l.b16 %v404
      %v444 = vunpack.c.l.b16 %v405
      %v445 = vunpack.c.l.b16 %v406
      %v446 = vunpack.c.l.b16 %v407
      %v447 = vunpack.c.l.b16 %v408
      %v448 = vunpack.c.l.b16 %v409
      %v449 = vunpack.c.l.b16 %v410
      %v450 = vunpack.c.l.b16 %v411
      %v451 = vunpack.c.l.b16 %v412
      %v452 = vunpack.c.l.b16 %v413
      %v453 = vunpack.c.l.b16 %v414
      %v454 = vunpack.c.l.b16 %v415
      %v455 = vunpack.c.l.b16 %v416
      %v456 = vunpack.c.l.b16 %v417
      %v457 = vunpack.c.l.b16 %v418
      %v458 = vunpack.c.l.b16 %v419
      %v459 = vpack.c.b16 %v444, %v443
      %v460 = vpack.c.b16 %v446, %v445
      %v461 = vpack.c.b16 %v448, %v447
      %v462 = vpack.c.b16 %v450, %v449
      %v463 = vpack.c.b16 %v452, %v451
      %v464 = vpack.c.b16 %v454, %v453
      %v465 = vpack.c.b16 %v456, %v455
      %v466 = vpack.c.b16 %v458, %v457
      %475 = vmatprep.subr.bf16.mxu0 0
      %476 = vmatpush1.bf16.msra.mxu0 %v459
      %477 = vmatprep.subr.bf16.mxu0 0
      %478 = vmatpush1.bf16.msra.mxu0 %v460
      %479 = vmatprep.subr.bf16.mxu0 0
      %480 = vmatpush1.bf16.msra.mxu0 %v461
      %481 = vmatprep.subr.bf16.mxu0 0
      %482 = vmatpush1.bf16.msra.mxu0 %v462
      %483 = vmatprep.subr.bf16.mxu0 0
      %484 = vmatpush1.bf16.msra.mxu0 %v463
      %485 = vmatprep.subr.bf16.mxu0 0
      %486 = vmatpush1.bf16.msra.mxu0 %v464
      %487 = vmatprep.subr.bf16.mxu0 0
      %488 = vmatpush1.bf16.msra.mxu0 %v465
      %489 = vmatprep.subr.bf16.mxu0 0
      %490 = vmatpush1.bf16.msra.mxu0 %v466
      %491 = vmatprep.subr.bf16.mxu0 0
      %492 = vmatpush1.bf16.msra.mxu0 0
      %493 = vmatprep.subr.bf16.mxu0 0
      %494 = vmatpush1.bf16.msra.mxu0 0
      %495 = vmatprep.subr.bf16.mxu0 0
      %496 = vmatpush1.bf16.msra.mxu0 0
      %497 = vmatprep.subr.bf16.mxu0 0
      %498 = vmatpush1.bf16.msra.mxu0 0
      %499 = vmatprep.subr.bf16.mxu0 0
      %500 = vmatpush1.bf16.msra.mxu0 0
      %501 = vmatprep.subr.bf16.mxu0 0
      %502 = vmatpush1.bf16.msra.mxu0 0
      %503 = vmatprep.subr.bf16.mxu0 0
      %504 = vmatpush1.bf16.msra.mxu0 0
      %505 = vmatprep.subr.bf16.mxu0 0
      %506 = vmatpush1.bf16.msra.mxu0 0
      %507 = vmatprep.mubr.bf16.mxu0 0
      %508 = vmatmul.mubr.bf16.gmra.mrb[0].mxu0 %v425
      %v509 = vpop.f32.mrb[0].mxu0
      %v510 = vadd.f32 0.0, %v509
      %v511 = vpop.f32.mrb[0].mxu0
      %v512 = vpop.f32.mrb[0].mxu0
      %v513 = vadd.f32 0.0, %v512
      %v514 = vpop.f32.mrb[0].mxu0
      %515 = vdwg.mxu0
      %v516 = vadd.f32 %v397, %v510
      %v517 = vadd.f32 %v400, %v513
      %v518 = vld [vmem:[%s2] sm:$0x1]
      %v519 = vld [vmem:[%s2 + $0x1] sm:$0x1]
      %v520 = vlaneseq
      %v521 = vshrl.u32 %v520, 7
      %v522 = vsub.s32 0, %v521
      %v523 = vrot.slane %v518, %v522
      %v524 = vmul.f32 %v516, %v523
      %v525 = vmul.f32 %v517, %v523
      %v526 = vlaneseq
      %v527 = vshrl.u32 %v526, 7
      %v528 = vsub.s32 0, %v527
      %v529 = vrot.slane %v519, %v528
      %v530 = vadd.f32 %v524, %v529
      %v531 = vadd.f32 %v525, %v529
      %v532 = vmax.f32 %v530, 0.0
      %v533 = vmax.f32 %v531, 0.0
      %v536 = vcombine.high %v532, %v532
      %v537 = vcombine.high %v533, %v533
      %vm540 = vcmask 1043456
      %v541 = vsel %vm540, %v532, -inf
      %v542 = vrot.slane %v541, 4
      %v543 = vmax.f32 %v541, %v542
      %v544 = vrot.slane %v543, 2
      %v545 = vmax.f32 %v543, %v544
      %v546 = vrot.slane %v545, 1
      %v547 = vmax.f32 %v545, %v546
      %v548 = vsel %vm540, %v536, -inf
      %v549 = vrot.slane %v548, 4
      %v550 = vmax.f32 %v548, %v549
      %v551 = vrot.slane %v550, 2
      %v552 = vmax.f32 %v550, %v551
      %v553 = vrot.slane %v552, 1
      %v554 = vmax.f32 %v552, %v553
      %v555 = vsel %vm540, %v533, -inf
      %v556 = vrot.slane %v555, 4
      %v557 = vmax.f32 %v555, %v556
      %v558 = vrot.slane %v557, 2
      %v559 = vmax.f32 %v557, %v558
      %v560 = vrot.slane %v559, 1
      %v561 = vmax.f32 %v559, %v560
      %v562 = vsel %vm540, %v537, -inf
      %v563 = vrot.slane %v562, 4
      %v564 = vmax.f32 %v562, %v563
      %v565 = vrot.slane %v564, 2
      %v566 = vmax.f32 %v564, %v565
      %v567 = vrot.slane %v566, 1
      %v568 = vmax.f32 %v566, %v567
      %vm573 = vcmask 1041409
      %v574 = vsel %vm573, %v554, %v547
      %vm575 = vcmask 1042434
      %v576 = vsel %vm575, %v561, %v574
      %vm577 = vcmask 1043459
      %v578 = vsel %vm577, %v568, %v576
      %580 = vst [vmem:[%s168] sm:$0xf] %v578
      %p581 = scmp.lt.s32.totalorder %s14, 1
      %s582 = scalar_select %p581, %s14, 1
      %s583 = smul.addr %s582, 4
      %s584 = scalar_lea.vmem %s3, %s583
      // Predicated region
      $region33: #{conv_block_forward.3} parent=31 // pred_check
        %p585 = pneg %p100
      $region34: #{conv_block_forward.3} parent=31 // pred_check_branch
        %587 = sbr.rel (%p585) target = $region36
      $region35: #{conv_block_forward.3} parent=31 // pred_region
        _
      $region36: #{conv_block_forward.3} parent=31 // pred_fallthru
        _
    $region32: #{conv_block_forward.3} parent=5 // pred_fallthru
      _
    %p588 = scmp.le.s32.totalorder 2, %s9
    // Predicated region
    $region37: #{conv_block_forward.3} parent=5 // pred_check
      %p589 = pneg %p588
    $region38: #{conv_block_forward.3} parent=5 // pred_check_branch
      %591 = sbr.rel (%p589) target = $region40
    $region39: #{conv_block_forward.3} parent=5 // pred_region
      %s592 = ssub.s32 %s9, 2
      // Predicated region
      $region41: #{conv_block_forward.3} parent=39 // pred_check
        %p593 = pneg %p106
      $region42: #{conv_block_forward.3} parent=39 // pred_check_branch
        %595 = sbr.rel (%p593) target = $region44
      $region43: #{conv_block_forward.3} parent=39 // pred_region
        %p596 = scmp.lt.s32.totalorder %s15, 1
        %s597 = scalar_select %p596, %s15, 1
        %s598 = smul.addr %s597, 4
        %s599 = scalar_lea.vmem %s3, %s598
      $region44: #{conv_block_forward.3} parent=39 // pred_fallthru
        _
    $region40: #{conv_block_forward.3} parent=5 // pred_fallthru
      _
  $region6: #{conv_block_forward.3} parent=0 // loop_footer
    %s13 = sadd.s32 1, %s9
  $region7: #{conv_block_forward.3} parent=0 // loop_footer_branch
    %8 = sbr.rel target = $region3
  $region8: #{conv_block_forward.3} parent=0 // loop_exit
    _

// kernel: conv_block_forward.2
$region0: #{conv_block_forward.2}
  #allocation0 [shape = 'u32[]', space=smem, size = 0x4, offset = 0x4, fixed_abs, tag = 'smem constant byte address 0x4 - core index']
  #allocation1 [shape = 'u32[144,128]{1,0:T(1,128)}', space=vmem, size = 0x12000, scoped, tag = 'internal scratch']
  %s0 = inlined_call_operand.vmem [shape: bf16[2,18,128], index: 0, kind: input, shape index: {}]
  %s1 = inlined_call_operand.vmem [shape: bf16[3,128,128], index: 1, kind: input, shape index: {}]
  %s2 = inlined_call_operand.vmem [shape: f32[2,128], index: 2, kind: output, shape index: {}]
  %s3 = sld [smem:[#allocation0]]
  $region45: #{conv_block_forward.2} parent=0
    _
  %s5 = ssub.s32 1, %s3
  %s6 = scalar_select 0, %s5, %s3
  loop: start=0, step=1, limit=4
  $region2: #{conv_block_forward.2} parent=0 // loop_pre_header
    _
  $region3: #{conv_block_forward.2} parent=0 // loop_header
    %s8 = sphi 0, %s12
    %p9 = scmp.ge.s32.totalorder %s8, 4
    %s18 = sphi 0, %s20
    %s21 = sphi 0, %s18
    %s22 = sphi 0, %s21
    %s38 = sphi 0, %s22
    %s42 = sphi 0, %s42
    %s44 = sphi 0, %s42
    %s45 = sphi 0, %s44
    %s59 = sphi 0, %s45
    %s63 = sphi 0, %s63
    %s65 = sphi 0, %s63
    %s66 = sphi 0, %s65
    %s80 = sphi 0, %s66
  $region4: #{conv_block_forward.2} parent=0 // loop_header_branch
    %11 = sbr.rel (%p9) target = $region8
  $region5: #{conv_block_forward.2} parent=0 // loop_body
    %s13 = ssub.s32 %s8, 1
    %s14 = ssub.s32 %s8, 2
    %s15 = sadd.s32 %s8, 1
    %s16 = ssub.s32 %s8, %s15
    %p17 = scmp.eq.s32.totalorder %s16, 0
    %s19 = sadd.s32 %s18, 1
    %s20 = scalar_select %p17, %s18, %s19
    %p23 = pneg %p17
    %p24 = scmp.eq.s32.totalorder %s8, 1
    %p25 = por %p23, %p24
    %p26 = scmp.ne.s32.totalorder %s18, %s21
    %p27 = scmp.eq.s32.totalorder %s8, 0
    %p28 = por %p26, %p27
    %p29 = scmp.ne.s32.totalorder %s18, %s21
    %p30 = scmp.eq.s32.totalorder %s13, 1
    %p31 = por %p29, %p30
    %p32 = scmp.ne.s32.totalorder %s21, %s22
    %p33 = scmp.eq.s32.totalorder %s13, 0
    %p34 = por %p32, %p33
    %p35 = scmp.ne.s32.totalorder %s21, %s22
    %p36 = scmp.eq.s32.totalorder %s14, 1
    %p37 = por %p35, %p36
    %p39 = scmp.ne.s32.totalorder %s22, %s38
    %p40 = scmp.eq.s32.totalorder %s14, 0
    %p41 = por %p39, %p40
    %s43 = sadd.s32 %s42, 1
    %p46 = scmp.eq.s32.totalorder %s8, 1
    %p47 = scmp.ne.s32.totalorder %s42, %s44
    %p48 = scmp.eq.s32.totalorder %s8, 0
    %p49 = por %p47, %p48
    %p50 = scmp.ne.s32.totalorder %s42, %s44
    %p51 = scmp.eq.s32.totalorder %s13, 1
    %p52 = por %p50, %p51
    %p53 = scmp.ne.s32.totalorder %s44, %s45
    %p54 = scmp.eq.s32.totalorder %s13, 0
    %p55 = por %p53, %p54
    %p56 = scmp.ne.s32.totalorder %s44, %s45
    %p57 = scmp.eq.s32.totalorder %s14, 1
    %p58 = por %p56, %p57
    %p60 = scmp.ne.s32.totalorder %s45, %s59
    %p61 = scmp.eq.s32.totalorder %s14, 0
    %p62 = por %p60, %p61
    %s64 = sadd.s32 %s63, 1
    %p67 = scmp.eq.s32.totalorder %s8, 1
    %p68 = scmp.ne.s32.totalorder %s63, %s65
    %p69 = scmp.eq.s32.totalorder %s8, 0
    %p70 = por %p68, %p69
    %p71 = scmp.ne.s32.totalorder %s63, %s65
    %p72 = scmp.eq.s32.totalorder %s13, 1
    %p73 = por %p71, %p72
    %p74 = scmp.ne.s32.totalorder %s65, %s66
    %p75 = scmp.eq.s32.totalorder %s13, 0
    %p76 = por %p74, %p75
    %p77 = scmp.ne.s32.totalorder %s65, %s66
    %p78 = scmp.eq.s32.totalorder %s14, 1
    %p79 = por %p77, %p78
    %p81 = scmp.ne.s32.totalorder %s66, %s80
    %p82 = scmp.eq.s32.totalorder %s14, 0
    %p83 = por %p81, %p82
    %p84 = scmp.le.s32.totalorder 1, %s8
    %p85 = scmp.lt.s32.totalorder %s8, 3
    %p86 = pnand %p84, %p85
    %p87 = pneg %p86
    // Predicated region
    $region9: #{conv_block_forward.2} parent=5 // pred_check
      _
    $region10: #{conv_block_forward.2} parent=5 // pred_check_branch
      %89 = sbr.rel (%p86) target = $region12
    $region11: #{conv_block_forward.2} parent=5 // pred_region
      %s90 = ssub.s32 %s8, 1
      // Predicated region
      $region13: #{conv_block_forward.2} parent=11 // pred_check
        %p91 = pneg %p55
      $region14: #{conv_block_forward.2} parent=11 // pred_check_branch
        %93 = sbr.rel (%p91) target = $region16
      $region15: #{conv_block_forward.2} parent=11 // pred_region
        _
      $region16: #{conv_block_forward.2} parent=11 // pred_fallthru
        _
    $region12: #{conv_block_forward.2} parent=5 // pred_fallthru
      _
    %p94 = scmp.lt.s32.totalorder %s8, 2
    // Predicated region
    $region17: #{conv_block_forward.2} parent=5 // pred_check
      %p95 = pneg %p94
    $region18: #{conv_block_forward.2} parent=5 // pred_check_branch
      %97 = sbr.rel (%p95) target = $region20
    $region19: #{conv_block_forward.2} parent=5 // pred_region
      // Predicated region
      $region21: #{conv_block_forward.2} parent=19 // pred_check
        %p98 = pneg %p28
      $region22: #{conv_block_forward.2} parent=19 // pred_check_branch
        %100 = sbr.rel (%p98) target = $region24
      $region23: #{conv_block_forward.2} parent=19 // pred_region
        %p101 = scmp.lt.s32.totalorder %s8, 1
        %s102 = scalar_select %p101, %s8, 1
        %s103 = smul.addr %s102, 3
        %s104 = smul.addr %s103, 4
        %s105 = scalar_lea.vmem %s0, %s104
      $region24: #{conv_block_forward.2} parent=19 // pred_fallthru
        _
    $region20: #{conv_block_forward.2} parent=5 // pred_fallthru
      _
    %p106 = scmp.le.s32.totalorder 1, %s8
    %p107 = scmp.lt.s32.totalorder %s8, 3
    %p108 = pnand %p106, %p107
    %p109 = pneg %p108
    // Predicated region
    $region25: #{conv_block_forward.2} parent=5 // pred_check
      _
    $region26: #{conv_block_forward.2} parent=5 // pred_check_branch
      %111 = sbr.rel (%p108) target = $region28
    $region27: #{conv_block_forward.2} parent=5 // pred_region
      %s112 = ssub.s32 %s8, 1
      %p113 = scmp.lt.s32.totalorder %s13, 1
      %s114 = scalar_select %p113, %s13, 1
      %s115 = smul.addr %s114, 3
      %s116 = smul.addr %s115, 4
      %s117 = scalar_lea.vmem %s0, %s116
      %p118 = pneg %p34
      %p119 = pneg %p31
      %p120 = pneg %p55
      %p121 = pneg %p52
      %p122 = pneg %p76
      %p123 = pneg %p73
      %p124 = scmp.lt.s32.totalorder %s13, 1
      %s125 = scalar_select %p124, %s13, 1
      %s126 = smul.addr %s125, 3
      %s127 = smul.addr %s126, 4
      %s128 = scalar_lea.vmem %s0, %s127
      %p130 = scmp.eq.s32.totalorder %s13, 0
      // Predicated region
      $region29: #{conv_block_forward.2} parent=27 // pred_check
        %p131 = pneg %p130
      $region30: #{conv_block_forward.2} parent=27 // pred_check_branch
        %133 = sbr.rel (%p131) target = $region32
      $region31: #{conv_block_forward.2} parent=27 // pred_region
        %134 = vst [vmem:[%s2] sm:$0x3] 0.0
      $region32: #{conv_block_forward.2} parent=27 // pred_fallthru
        _
      %v135 = vld [vmem:[%s128] sm:$0xf]
      %v136 = vld [vmem:[%s128 + $0x4] sm:$0xf]
      %v137 = vld [vmem:[%s128 + $0x8] sm:$0x1]
      %v138 = vunpack.c.l.bf16 %v135
      %v139 = vunpack.c.l.bf16 %v136
      %v140 = vunpack.c.l.bf16 %v137
      %v141 = vpack.c.bf16 %v139, %v138
      %v142 = vld [vmem:[%s1] sm:$0xf]
      %v143 = vld [vmem:[%s1 + $0x4] sm:$0xf]
      %v144 = vld [vmem:[%s1 + $0x8] sm:$0xf]
      %v145 = vld [vmem:[%s1 + $0xc] sm:$0xf]
      %v146 = vld [vmem:[%s1 + $0x10] sm:$0xf]
      %v147 = vld [vmem:[%s1 + $0x14] sm:$0xf]
      %v148 = vld [vmem:[%s1 + $0x18] sm:$0xf]
      %v149 = vld [vmem:[%s1 + $0x1c] sm:$0xf]
      %v150 = vld [vmem:[%s1 + $0x20] sm:$0xf]
      %v151 = vld [vmem:[%s1 + $0x24] sm:$0xf]
      %v152 = vld [vmem:[%s1 + $0x28] sm:$0xf]
      %v153 = vld [vmem:[%s1 + $0x2c] sm:$0xf]
      %v154 = vld [vmem:[%s1 + $0x30] sm:$0xf]
      %v155 = vld [vmem:[%s1 + $0x34] sm:$0xf]
      %v156 = vld [vmem:[%s1 + $0x38] sm:$0xf]
      %v157 = vld [vmem:[%s1 + $0x3c] sm:$0xf]
      %v158 = vpack.c.bf16 %v140, %v140
      %s159 = scalar_lea.vmem %s1, 64
      %v160 = vld [vmem:[%s159] sm:$0xf]
      %v161 = vld [vmem:[%s159 + $0x4] sm:$0xf]
      %v162 = vld [vmem:[%s159 + $0x8] sm:$0xf]
      %v163 = vld [vmem:[%s159 + $0xc] sm:$0xf]
      %v164 = vld [vmem:[%s159 + $0x10] sm:$0xf]
      %v165 = vld [vmem:[%s159 + $0x14] sm:$0xf]
      %v166 = vld [vmem:[%s159 + $0x18] sm:$0xf]
      %v167 = vld [vmem:[%s159 + $0x1c] sm:$0xf]
      %v168 = vld [vmem:[%s159 + $0x20] sm:$0xf]
      %v169 = vld [vmem:[%s159 + $0x24] sm:$0xf]
      %v170 = vld [vmem:[%s159 + $0x28] sm:$0xf]
      %v171 = vld [vmem:[%s159 + $0x2c] sm:$0xf]
      %v172 = vld [vmem:[%s159 + $0x30] sm:$0xf]
      %v173 = vld [vmem:[%s159 + $0x34] sm:$0xf]
      %v174 = vld [vmem:[%s159 + $0x38] sm:$0xf]
      %v175 = vld [vmem:[%s159 + $0x3c] sm:$0xf]
      %vm176 = vsmask.f32 7424
      %v178 = vshrl.u32 %v141, 16
      %v180 = vshll.u32 %v141, 16
      %v182 = vrot.slane %v180, 1
      %v183 = vor.u32 %v178, %v182
      %v185 = vshll.u32 %v158, 16
      %v187 = vrot.slane %v185, 1
      %v188 = vsel %vm176, %v183, %v187
      %v206 = vunpack.c.l.b16 %v160
      %v207 = vunpack.c.l.b16 %v161
      %v208 = vunpack.c.l.b16 %v162
      %v209 = vunpack.c.l.b16 %v163
      %v210 = vunpack.c.l.b16 %v164
      %v211 = vunpack.c.l.b16 %v165
      %v212 = vunpack.c.l.b16 %v166
      %v213 = vunpack.c.l.b16 %v167
      %v214 = vunpack.c.l.b16 %v168
      %v215 = vunpack.c.l.b16 %v169
      %v216 = vunpack.c.l.b16 %v170
      %v217 = vunpack.c.l.b16 %v171
      %v218 = vunpack.c.l.b16 %v172
      %v219 = vunpack.c.l.b16 %v173
      %v220 = vunpack.c.l.b16 %v174
      %v221 = vunpack.c.l.b16 %v175
      %v222 = vpack.c.b16 %v207, %v206
      %v223 = vpack.c.b16 %v209, %v208
      %v224 = vpack.c.b16 %v211, %v210
      %v225 = vpack.c.b16 %v213, %v212
      %v226 = vpack.c.b16 %v215, %v214
      %v227 = vpack.c.b16 %v217, %v216
      %v228 = vpack.c.b16 %v219, %v218
      %v229 = vpack.c.b16 %v221, %v220
      %238 = vmatprep.subr.bf16.mxu0 0
      %239 = vmatpush1.bf16.msra.mxu0 %v222
      %240 = vmatprep.subr.bf16.mxu0 0
      %241 = vmatpush1.bf16.msra.mxu0 %v223
      %242 = vmatprep.subr.bf16.mxu0 0
      %243 = vmatpush1.bf16.msra.mxu0 %v224
      %244 = vmatprep.subr.bf16.mxu0 0
      %245 = vmatpush1.bf16.msra.mxu0 %v225
      %246 = vmatprep.subr.bf16.mxu0 0
      %247 = vmatpush1.bf16.msra.mxu0 %v226
      %248 = vmatprep.subr.bf16.mxu0 0
      %249 = vmatpush1.bf16.msra.mxu0 %v227
      %250 = vmatprep.subr.bf16.mxu0 0
      %251 = vmatpush1.bf16.msra.mxu0 %v228
      %252 = vmatprep.subr.bf16.mxu0 0
      %253 = vmatpush1.bf16.msra.mxu0 %v229
      %254 = vmatprep.subr.bf16.mxu0 0
      %255 = vmatpush1.bf16.msra.mxu0 0
      %256 = vmatprep.subr.bf16.mxu0 0
      %257 = vmatpush1.bf16.msra.mxu0 0
      %258 = vmatprep.subr.bf16.mxu0 0
      %259 = vmatpush1.bf16.msra.mxu0 0
      %260 = vmatprep.subr.bf16.mxu0 0
      %261 = vmatpush1.bf16.msra.mxu0 0
      %262 = vmatprep.subr.bf16.mxu0 0
      %263 = vmatpush1.bf16.msra.mxu0 0
      %264 = vmatprep.subr.bf16.mxu0 0
      %265 = vmatpush1.bf16.msra.mxu0 0
      %266 = vmatprep.subr.bf16.mxu0 0
      %267 = vmatpush1.bf16.msra.mxu0 0
      %268 = vmatprep.subr.bf16.mxu0 0
      %269 = vmatpush1.bf16.msra.mxu0 0
      %270 = vmatprep.mubr.bf16.mxu0 0
      %271 = vmatmul.mubr.bf16.gmra.mrb[0].mxu0 %v188
      %v272 = vpop.f32.mrb[0].mxu0
      %v273 = vadd.f32 0.0, %v272
      %v274 = vpop.f32.mrb[0].mxu0
      %v275 = vpop.f32.mrb[0].mxu0
      %v276 = vadd.f32 0.0, %v275
      %v277 = vpop.f32.mrb[0].mxu0
      %278 = vdwg.mxu0
      %v295 = vunpack.c.l.b16 %v142
      %v296 = vunpack.c.l.b16 %v143
      %v297 = vunpack.c.l.b16 %v144
      %v298 = vunpack.c.l.b16 %v145
      %v299 = vunpack.c.l.b16 %v146
      %v300 = vunpack.c.l.b16 %v147
      %v301 = vunpack.c.l.b16 %v148
      %v302 = vunpack.c.l.b16 %v149
      %v303 = vunpack.c.l.b16 %v150
      %v304 = vunpack.c.l.b16 %v151
      %v305 = vunpack.c.l.b16 %v152
      %v306 = vunpack.c.l.b16 %v153
      %v307 = vunpack.c.l.b16 %v154
      %v308 = vunpack.c.l.b16 %v155
      %v309 = vunpack.c.l.b16 %v156
      %v310 = vunpack.c.l.b16 %v157
      %v311 = vpack.c.b16 %v296, %v295
      %v312 = vpack.c.b16 %v298, %v297
      %v313 = vpack.c.b16 %v300, %v299
      %v314 = vpack.c.b16 %v302, %v301
      %v315 = vpack.c.b16 %v304, %v303
      %v316 = vpack.c.b16 %v306, %v305
      %v317 = vpack.c.b16 %v308, %v307
      %v318 = vpack.c.b16 %v310, %v309
      %327 = vmatprep.subr.bf16.mxu0 0
      %328 = vmatpush1.bf16.msra.mxu0 %v311
      %329 = vmatprep.subr.bf16.mxu0 0
      %330 = vmatpush1.bf16.msra.mxu0 %v312
      %331 = vmatprep.subr.bf16.mxu0 0
      %332 = vmatpush1.bf16.msra.mxu0 %v313
      %333 = vmatprep.subr.bf16.mxu0 0
      %334 = vmatpush1.bf16.msra.mxu0 %v314
      %335 = vmatprep.subr.bf16.mxu0 0
      %336 = vmatpush1.bf16.msra.mxu0 %v315
      %337 = vmatprep.subr.bf16.mxu0 0
      %338 = vmatpush1.bf16.msra.mxu0 %v316
      %339 = vmatprep.subr.bf16.mxu0 0
      %340 = vmatpush1.bf16.msra.mxu0 %v317
      %341 = vmatprep.subr.bf16.mxu0 0
      %342 = vmatpush1.bf16.msra.mxu0 %v318
      %343 = vmatprep.subr.bf16.mxu0 0
      %344 = vmatpush1.bf16.msra.mxu0 0
      %345 = vmatprep.subr.bf16.mxu0 0
      %346 = vmatpush1.bf16.msra.mxu0 0
      %347 = vmatprep.subr.bf16.mxu0 0
      %348 = vmatpush1.bf16.msra.mxu0 0
      %349 = vmatprep.subr.bf16.mxu0 0
      %350 = vmatpush1.bf16.msra.mxu0 0
      %351 = vmatprep.subr.bf16.mxu0 0
      %352 = vmatpush1.bf16.msra.mxu0 0
      %353 = vmatprep.subr.bf16.mxu0 0
      %354 = vmatpush1.bf16.msra.mxu0 0
      %355 = vmatprep.subr.bf16.mxu0 0
      %356 = vmatpush1.bf16.msra.mxu0 0
      %357 = vmatprep.subr.bf16.mxu0 0
      %358 = vmatpush1.bf16.msra.mxu0 0
      %359 = vmatprep.mubr.bf16.mxu0 0
      %360 = vmatmul.mubr.bf16.gmra.mrb[0].mxu0 %v141
      %v361 = vpop.f32.mrb[0].mxu0
      %v362 = vadd.f32 %v273, %v361
      %v363 = vpop.f32.mrb[0].mxu0
      %v364 = vpop.f32.mrb[0].mxu0
      %v365 = vadd.f32 %v276, %v364
      %v366 = vpop.f32.mrb[0].mxu0
      %367 = vdwg.mxu0
      %s368 = scalar_lea.vmem %s1, 128
      %v369 = vld [vmem:[%s368] sm:$0xf]
      %v370 = vld [vmem:[%s368 + $0x4] sm:$0xf]
      %v371 = vld [vmem:[%s368 + $0x8] sm:$0xf]
      %v372 = vld [vmem:[%s368 + $0xc] sm:$0xf]
      %v373 = vld [vmem:[%s368 + $0x10] sm:$0xf]
      %v374 = vld [vmem:[%s368 + $0x14] sm:$0xf]
      %v375 = vld [vmem:[%s368 + $0x18] sm:$0xf]
      %v376 = vld [vmem:[%s368 + $0x1c] sm:$0xf]
      %v377 = vld [vmem:[%s368 + $0x20] sm:$0xf]
      %v378 = vld [vmem:[%s368 + $0x24] sm:$0xf]
      %v379 = vld [vmem:[%s368 + $0x28] sm:$0xf]
      %v380 = vld [vmem:[%s368 + $0x2c] sm:$0xf]
      %v381 = vld [vmem:[%s368 + $0x30] sm:$0xf]
      %v382 = vld [vmem:[%s368 + $0x34] sm:$0xf]
      %v383 = vld [vmem:[%s368 + $0x38] sm:$0xf]
      %v384 = vld [vmem:[%s368 + $0x3c] sm:$0xf]
      %vm387 = vcmask 1046528
      %v388 = vrot.slane %v141, 1
      %v389 = vrot.slane %v158, 1
      %v390 = vsel %vm387, %v388, %v389
      %v408 = vunpack.c.l.b16 %v369
      %v409 = vunpack.c.l.b16 %v370
      %v410 = vunpack.c.l.b16 %v371
      %v411 = vunpack.c.l.b16 %v372
      %v412 = vunpack.c.l.b16 %v373
      %v413 = vunpack.c.l.b16 %v374
      %v414 = vunpack.c.l.b16 %v375
      %v415 = vunpack.c.l.b16 %v376
      %v416 = vunpack.c.l.b16 %v377
      %v417 = vunpack.c.l.b16 %v378
      %v418 = vunpack.c.l.b16 %v379
      %v419 = vunpack.c.l.b16 %v380
      %v420 = vunpack.c.l.b16 %v381
      %v421 = vunpack.c.l.b16 %v382
      %v422 = vunpack.c.l.b16 %v383
      %v423 = vunpack.c.l.b16 %v384
      %v424 = vpack.c.b16 %v409, %v408
      %v425 = vpack.c.b16 %v411, %v410
      %v426 = vpack.c.b16 %v413, %v412
      %v427 = vpack.c.b16 %v415, %v414
      %v428 = vpack.c.b16 %v417, %v416
      %v429 = vpack.c.b16 %v419, %v418
      %v430 = vpack.c.b16 %v421, %v420
      %v431 = vpack.c.b16 %v423, %v422
      %440 = vmatprep.subr.bf16.mxu0 0
      %441 = vmatpush1.bf16.msra.mxu0 %v424
      %442 = vmatprep.subr.bf16.mxu0 0
      %443 = vmatpush1.bf16.msra.mxu0 %v425
      %444 = vmatprep.subr.bf16.mxu0 0
      %445 = vmatpush1.bf16.msra.mxu0 %v426
      %446 = vmatprep.subr.bf16.mxu0 0
      %447 = vmatpush1.bf16.msra.mxu0 %v427
      %448 = vmatprep.subr.bf16.mxu0 0
      %449 = vmatpush1.bf16.msra.mxu0 %v428
      %450 = vmatprep.subr.bf16.mxu0 0
      %451 = vmatpush1.bf16.msra.mxu0 %v429
      %452 = vmatprep.subr.bf16.mxu0 0
      %453 = vmatpush1.bf16.msra.mxu0 %v430
      %454 = vmatprep.subr.bf16.mxu0 0
      %455 = vmatpush1.bf16.msra.mxu0 %v431
      %456 = vmatprep.subr.bf16.mxu0 0
      %457 = vmatpush1.bf16.msra.mxu0 0
      %458 = vmatprep.subr.bf16.mxu0 0
      %459 = vmatpush1.bf16.msra.mxu0 0
      %460 = vmatprep.subr.bf16.mxu0 0
      %461 = vmatpush1.bf16.msra.mxu0 0
      %462 = vmatprep.subr.bf16.mxu0 0
      %463 = vmatpush1.bf16.msra.mxu0 0
      %464 = vmatprep.subr.bf16.mxu0 0
      %465 = vmatpush1.bf16.msra.mxu0 0
      %466 = vmatprep.subr.bf16.mxu0 0
      %467 = vmatpush1.bf16.msra.mxu0 0
      %468 = vmatprep.subr.bf16.mxu0 0
      %469 = vmatpush1.bf16.msra.mxu0 0
      %470 = vmatprep.subr.bf16.mxu0 0
      %471 = vmatpush1.bf16.msra.mxu0 0
      %472 = vmatprep.mubr.bf16.mxu0 0
      %473 = vmatmul.mubr.bf16.gmra.mrb[0].mxu0 %v390
      %v474 = vpop.f32.mrb[0].mxu0
      %v475 = vadd.f32 0.0, %v474
      %v476 = vpop.f32.mrb[0].mxu0
      %v477 = vpop.f32.mrb[0].mxu0
      %v478 = vadd.f32 0.0, %v477
      %v479 = vpop.f32.mrb[0].mxu0
      %480 = vdwg.mxu0
      %v481 = vadd.f32 %v362, %v475
      %v482 = vadd.f32 %v365, %v478
      %v483 = vadd.f32 %v481, %v482
      %v484 = vrot.slane %v483, 4
      %v485 = vadd.f32 %v483, %v484
      %v486 = vrot.slane %v485, 2
      %v487 = vadd.f32 %v485, %v486
      %v488 = vrot.slane %v487, 1
      %v489 = vadd.f32 %v487, %v488
      %v490 = vmul.f32 %v481, %v481
      %v491 = vmul.f32 %v482, %v482
      %v492 = vadd.f32 %v490, %v491
      %v493 = vrot.slane %v492, 4
      %v494 = vadd.f32 %v492, %v493
      %v495 = vrot.slane %v494, 2
      %v496 = vadd.f32 %v494, %v495
      %v497 = vrot.slane %v496, 1
      %v498 = vadd.f32 %v496, %v497
      %v499 = vld [vmem:[%s2] sm:$0x3]
      %vm500 = vcmask 1040384
      %v501 = vsel %vm500, %v489, %v498
      %v502 = vadd.f32 %v499, %v501
      %503 = vst [vmem:[%s2] sm:$0x3] %v502
      // Predicated region
      $region33: #{conv_block_forward.2} parent=27 // pred_check
        %p504 = pneg %p73
      $region34: #{conv_block_forward.2} parent=27 // pred_check_branch
        %506 = sbr.rel (%p504) target = $region36
      $region35: #{conv_block_forward.2} parent=27 // pred_region
        _
      $region36: #{conv_block_forward.2} parent=27 // pred_fallthru
        _
      // Predicated region
      $region37: #{conv_block_forward.2} parent=27 // pred_check
        %p507 = pneg %p73
      $region38: #{conv_block_forward.2} parent=27 // pred_check_branch
        %509 = sbr.rel (%p507) target = $region40
      $region39: #{conv_block_forward.2} parent=27 // pred_region
        _
      $region40: #{conv_block_forward.2} parent=27 // pred_fallthru
        _
    $region28: #{conv_block_forward.2} parent=5 // pred_fallthru
      _
    %p510 = scmp.le.s32.totalorder 2, %s8
    // Predicated region
    $region41: #{conv_block_forward.2} parent=5 // pred_check
      %p511 = pneg %p510
    $region42: #{conv_block_forward.2} parent=5 // pred_check_branch
      %513 = sbr.rel (%p511) target = $region44
    $region43: #{conv_block_forward.2} parent=5 // pred_region
      %s514 = ssub.s32 %s8, 2
    $region44: #{conv_block_forward.2} parent=5 // pred_fallthru
      _
  $region6: #{conv_block_forward.2} parent=0 // loop_footer
    %s12 = sadd.s32 1, %s8
  $region7: #{conv_block_forward.2} parent=0 // loop_footer_branch
    %7 = sbr.rel target = $region3
  $region8: #{conv_block_forward.2} parent=0 // loop_exit
    _

</llo_original>
